<compile_context>
chip_gen: v7x
topology: tpu7x:2x2x1
jax: 0.10.0
libtpu: 0.0.40
codegen_flags: <defaults>
</compile_context>

<pallas_src>
import jax
import jax.numpy as jnp
from jax.experimental import pallas as pl
from jax.experimental.pallas import tpu as pltpu

HIDDEN = 64
LANE = 128           # TPU lane width; hidden dim is zero-padded to this so all
                     # intermediate vregs / MXU operands are lane-dense.
MAX_TILE_B = 1024    # batch rows per grid step (multiple of 16); per-step VMEM
                     # footprint at 1024 rows is only a few MiB.


def _round_up(a, m):
    return (a + m - 1) // m * m


def _mlp_kernel(x_ref, w1_ref, b1_ref, w2_ref, b2_ref, w3_ref, b3_ref, o_ref):
    # Fused per-tile forward: 3x MXU matmul + VPU bias/ReLU, all in VMEM.
    # Matmul inputs use the weight dtype (f32 or bf16); accumulation, bias add,
    # ReLU and the stored output stay in f32 (important on v5e: no bf16 VPU).
    mxu_dtype = w1_ref.dtype
    x = x_ref[...]
    h = jnp.dot(x, w1_ref[...], preferred_element_type=jnp.float32) + b1_ref[...]
    h = jnp.maximum(h, 0.0)
    h = jnp.dot(h.astype(mxu_dtype), w2_ref[...],
                preferred_element_type=jnp.float32) + b2_ref[...]
    h = jnp.maximum(h, 0.0)
    out = jnp.dot(h.astype(mxu_dtype), w3_ref[...],
                  preferred_element_type=jnp.float32) + b3_ref[...]
    o_ref[...] = out.astype(o_ref.dtype)   # only the logical output columns


def mlp_forward(x, params, *, tile_b=MAX_TILE_B):
    """x: (B, input_dim); params: kernel-layout weights/biases from init_params.

    Returns (B, output_dim) float32, equal to
    relu(relu(x @ W1 + b1) @ W2 + b2) @ W3 + b3 with the unpadded parameters.
    """
    w1, b1 = params["w1"], params["b1"]
    w2, b2 = params["w2"], params["b2"]
    w3, b3 = params["w3"], params["b3"]

    B, in_dim = x.shape
    hid_pad = w1.shape[1]          # 128 (zero-padded hidden dim)
    out_dim = w3.shape[1]          # logical output width (unpadded)

    # Match the MXU input dtype of the weights (no-op for the f32 path).
    x = x.astype(w1.dtype)

    # Batch tile: multiple of 16 sublanes (safe for f32 and bf16 packing),
    # sized so the grid has >= 2 steps whenever possible (both v7x TensorCores
    # get work via the "parallel" axis), capped at tile_b.
    tb = max(16, _round_up(pl.cdiv(B, 2), 16))
    tb = min(tb, tile_b)
    grid = (pl.cdiv(B, tb),)       # ragged last block: OOB rows masked on store

    def _resident(arr):
        # Weights/biases: resident full block, DMA'd once, never re-indexed.
        return pl.BlockSpec(arr.shape, lambda i: (0, 0))

    w_isize = jnp.dtype(w1.dtype).itemsize
    flops = 2 * B * (in_dim * hid_pad + hid_pad * hid_pad + hid_pad * out_dim)
    bytes_accessed = (
        w_isize * B * in_dim                      # x read
        + 4 * B * out_dim                         # logical output write
        + w_isize * (w1.size + w2.size + w3.size) # weights (read once)
        + 4 * (b1.size + b2.size + b3.size))      # biases  (read once)

    return pl.pallas_call(
        _mlp_kernel,
        out_shape=jax.ShapeDtypeStruct((B, out_dim), jnp.float32),
        grid=grid,
        in_specs=[
            pl.BlockSpec((tb, in_dim), lambda i: (i, 0)),   # x tile
            _resident(w1), _resident(b1),
            _resident(w2), _resident(b2),
            _resident(w3), _resident(b3),
        ],
        out_specs=pl.BlockSpec((tb, out_dim), lambda i: (i, 0)),
        compiler_params=pltpu.CompilerParams(
            dimension_semantics=("parallel",)),
        cost_estimate=pl.CostEstimate(
            flops=flops, transcendentals=0, bytes_accessed=bytes_accessed),
    )(x, w1, b1, w2, b2, w3, b3)


def init_params(key, input_dim, output_dim, hidden=HIDDEN, scale=0.1,
                mxu_dtype=jnp.float32):
    """Returns (kernel_layout_params, logical_params_for_reference).

    Kernel layout: hidden dim zero-padded to 128 lanes (ReLU(0)=0 and the pad
    rows/cols of the next weight are zero, so results on the logical output
    are unchanged); output dim left at its logical width; weights optionally
    cast to bf16 (MXU input format) while biases stay f32 for f32 elementwise.
    """
    k1, k2, k3, k4, k5, k6 = jax.random.split(key, 6)
    w1 = scale * jax.random.normal(k1, (input_dim, hidden), jnp.float32)
    b1 = scale * jax.random.normal(k2, (hidden,), jnp.float32)
    w2 = scale * jax.random.normal(k3, (hidden, hidden), jnp.float32)
    b2 = scale * jax.random.normal(k4, (hidden,), jnp.float32)
    w3 = scale * jax.random.normal(k5, (hidden, output_dim), jnp.float32)
    b3 = scale * jax.random.normal(k6, (output_dim,), jnp.float32)

    hp = _round_up(hidden, LANE)
    pad = hp - hidden

    kernel_params = {
        "w1": jnp.pad(w1, ((0, 0), (0, pad))).astype(mxu_dtype),
        "b1": jnp.pad(b1, (0, pad)).reshape(1, hp),
        "w2": jnp.pad(w2, ((0, pad), (0, pad))).astype(mxu_dtype),
        "b2": jnp.pad(b2, (0, pad)).reshape(1, hp),
        "w3": jnp.pad(w3, ((0, pad), (0, 0))).astype(mxu_dtype),
        "b3": b3.reshape(1, output_dim),
    }
    logical = {"w1": w1, "b1": b1, "w2": w2, "b2": b2, "w3": w3, "b3": b3}
    return kernel_params, logical


def mlp_reference(x, logical):
    """Pure-JAX reference with the UNpadded f32 parameters (== PyTorch forward)."""
    h = jnp.maximum(x @ logical["w1"] + logical["b1"], 0.0)
    h = jnp.maximum(h @ logical["w2"] + logical["b2"], 0.0)
    return h @ logical["w3"] + logical["b3"]


if __name__ == "__main__":
    key = jax.random.PRNGKey(0)
    kx, kp = jax.random.split(key)

    batch, input_dim, output_dim = 24, 32, 16
    x = jax.random.normal(kx, (batch, input_dim), jnp.float32)

    # f32 path: bit-exact vs the reference on the logical output.
    params_f32, logical = init_params(kp, input_dim, output_dim)
    out = jax.block_until_ready(mlp_forward(x, params_f32))
    ref = mlp_reference(x, logical)
    assert out.shape == (batch, output_dim), out.shape
    assert jnp.allclose(out, ref, atol=1e-5, rtol=1e-5), "f32 mismatch vs reference"

    # bf16 MXU-input path (f32 accumulation / elementwise): the v6e/v7x lever.
    params_bf16, _ = init_params(kp, input_dim, output_dim, mxu_dtype=jnp.bfloat16)
    out_bf16 = jax.block_until_ready(mlp_forward(x, params_bf16))
    assert out_bf16.shape == (batch, output_dim), out_bf16.shape
    assert jnp.allclose(out_bf16, ref, atol=5e-2, rtol=5e-2), "bf16 mismatch vs reference"

    print("KERNEL_OK")
</pallas_src>

<mosaic_0001>
module attributes {stable_mosaic.version = 11 : i64} {
  func.func @_mlp_kernel(%arg0: i32, %arg1: memref<16x32xf32, #tpu.memory_space<vmem>>, %arg2: memref<32x128xf32, #tpu.memory_space<vmem>>, %arg3: memref<1x128xf32, #tpu.memory_space<vmem>>, %arg4: memref<128x128xf32, #tpu.memory_space<vmem>>, %arg5: memref<1x128xf32, #tpu.memory_space<vmem>>, %arg6: memref<128x16xf32, #tpu.memory_space<vmem>>, %arg7: memref<1x16xf32, #tpu.memory_space<vmem>>, %arg8: memref<16x16xf32, #tpu.memory_space<vmem>>) attributes {dimension_semantics = [#tpu.dimension_semantics<parallel>], iteration_bounds = array<i64: 2>, scalar_prefetch = 0 : i64, scratch_operands = 0 : i64, tpu.core_type = #tpu.core_type<tc>, window_params = [{transform_indices = @transform_0, window_bounds = array<i64: 16, 32>}, {pipeline_mode = #tpu.pipeline_mode<synchronous>, transform_indices = @transform_1, window_bounds = array<i64: 32, 128>}, {pipeline_mode = #tpu.pipeline_mode<synchronous>, transform_indices = @transform_2, window_bounds = array<i64: 1, 128>}, {pipeline_mode = #tpu.pipeline_mode<synchronous>, transform_indices = @transform_3, window_bounds = array<i64: 128, 128>}, {pipeline_mode = #tpu.pipeline_mode<synchronous>, transform_indices = @transform_4, window_bounds = array<i64: 1, 128>}, {pipeline_mode = #tpu.pipeline_mode<synchronous>, transform_indices = @transform_5, window_bounds = array<i64: 128, 16>}, {pipeline_mode = #tpu.pipeline_mode<synchronous>, transform_indices = @transform_6, window_bounds = array<i64: 1, 16>}, {transform_indices = @transform_7, window_bounds = array<i64: 16, 16>}]} {
    %c0 = arith.constant 0 : index
    %c0_0 = arith.constant 0 : index
    %0 = vector.load %arg1[%c0, %c0_0] : memref<16x32xf32, #tpu.memory_space<vmem>>, vector<16x32xf32>
    %c0_1 = arith.constant 0 : index
    %c0_2 = arith.constant 0 : index
    %1 = vector.load %arg2[%c0_1, %c0_2] : memref<32x128xf32, #tpu.memory_space<vmem>>, vector<32x128xf32>
    %cst = arith.constant dense<0.000000e+00> : vector<16x128xf32>
    %2 = tpu.matmul %0, %1, %cst {dimension_numbers = #tpu.dot_dimension_numbers<[1], [0], [0], [1], [0, 0, 1, 1], [], []>} : vector<16x32xf32>, vector<32x128xf32>, vector<16x128xf32> -> vector<16x128xf32>
    %c0_3 = arith.constant 0 : index
    %c0_4 = arith.constant 0 : index
    %3 = vector.load %arg3[%c0_3, %c0_4] : memref<1x128xf32, #tpu.memory_space<vmem>>, vector<1x128xf32>
    %4 = vector.broadcast %3 : vector<1x128xf32> to vector<16x128xf32>
    %5 = arith.addf %2, %4 : vector<16x128xf32>
    %cst_5 = arith.constant 0.000000e+00 : f32
    %6 = vector.broadcast %cst_5 : f32 to vector<16x128xf32>
    %7 = arith.maximumf %5, %6 : vector<16x128xf32>
    %c0_6 = arith.constant 0 : index
    %c0_7 = arith.constant 0 : index
    %8 = vector.load %arg4[%c0_6, %c0_7] : memref<128x128xf32, #tpu.memory_space<vmem>>, vector<128x128xf32>
    %cst_8 = arith.constant dense<0.000000e+00> : vector<16x128xf32>
    %9 = tpu.matmul %7, %8, %cst_8 {dimension_numbers = #tpu.dot_dimension_numbers<[1], [0], [0], [1], [0, 0, 1, 1], [], []>} : vector<16x128xf32>, vector<128x128xf32>, vector<16x128xf32> -> vector<16x128xf32>
    %c0_9 = arith.constant 0 : index
    %c0_10 = arith.constant 0 : index
    %10 = vector.load %arg5[%c0_9, %c0_10] : memref<1x128xf32, #tpu.memory_space<vmem>>, vector<1x128xf32>
    %11 = vector.broadcast %10 : vector<1x128xf32> to vector<16x128xf32>
    %12 = arith.addf %9, %11 : vector<16x128xf32>
    %cst_11 = arith.constant 0.000000e+00 : f32
    %13 = vector.broadcast %cst_11 : f32 to vector<16x128xf32>
    %14 = arith.maximumf %12, %13 : vector<16x128xf32>
    %c0_12 = arith.constant 0 : index
    %c0_13 = arith.constant 0 : index
    %15 = vector.load %arg6[%c0_12, %c0_13] : memref<128x16xf32, #tpu.memory_space<vmem>>, vector<128x16xf32>
    %cst_14 = arith.constant dense<0.000000e+00> : vector<16x16xf32>
    %16 = tpu.matmul %14, %15, %cst_14 {dimension_numbers = #tpu.dot_dimension_numbers<[1], [0], [0], [1], [0, 0, 1, 1], [], []>} : vector<16x128xf32>, vector<128x16xf32>, vector<16x16xf32> -> vector<16x16xf32>
    %c0_15 = arith.constant 0 : index
    %c0_16 = arith.constant 0 : index
    %17 = vector.load %arg7[%c0_15, %c0_16] : memref<1x16xf32, #tpu.memory_space<vmem>>, vector<1x16xf32>
    %18 = vector.broadcast %17 : vector<1x16xf32> to vector<16x16xf32>
    %19 = arith.addf %16, %18 : vector<16x16xf32>
    %c0_17 = arith.constant 0 : index
    %c0_18 = arith.constant 0 : index
    %20 = vector.load %arg8[%c0_17, %c0_18] : memref<16x16xf32, #tpu.memory_space<vmem>>, vector<16x16xf32>
    tpu.vector_store %arg8[%c0_17, %c0_18], %19 {strides = array<i32>} : memref<16x16xf32, #tpu.memory_space<vmem>>, vector<16x16xf32>,
    return
  }
  func.func @transform_0(%arg0: i32) -> (i32, i32) {
    %c0_i32 = arith.constant 0 : i32
    %c0_i32_0 = arith.constant 0 : i32
    return %arg0, %c0_i32 : i32, i32
  }
  func.func @transform_1(%arg0: i32) -> (i32, i32) {
    %c0_i32 = arith.constant 0 : i32
    %c0_i32_0 = arith.constant 0 : i32
    %c0_i32_1 = arith.constant 0 : i32
    return %c0_i32, %c0_i32_0 : i32, i32
  }
  func.func @transform_2(%arg0: i32) -> (i32, i32) {
    %c0_i32 = arith.constant 0 : i32
    %c0_i32_0 = arith.constant 0 : i32
    %c0_i32_1 = arith.constant 0 : i32
    return %c0_i32, %c0_i32_0 : i32, i32
  }
  func.func @transform_3(%arg0: i32) -> (i32, i32) {
    %c0_i32 = arith.constant 0 : i32
    %c0_i32_0 = arith.constant 0 : i32
    %c0_i32_1 = arith.constant 0 : i32
    return %c0_i32, %c0_i32_0 : i32, i32
  }
  func.func @transform_4(%arg0: i32) -> (i32, i32) {
    %c0_i32 = arith.constant 0 : i32
    %c0_i32_0 = arith.constant 0 : i32
    %c0_i32_1 = arith.constant 0 : i32
    return %c0_i32, %c0_i32_0 : i32, i32
  }
  func.func @transform_5(%arg0: i32) -> (i32, i32) {
    %c0_i32 = arith.constant 0 : i32
    %c0_i32_0 = arith.constant 0 : i32
    %c0_i32_1 = arith.constant 0 : i32
    return %c0_i32, %c0_i32_0 : i32, i32
  }
  func.func @transform_6(%arg0: i32) -> (i32, i32) {
    %c0_i32 = arith.constant 0 : i32
    %c0_i32_0 = arith.constant 0 : i32
    %c0_i32_1 = arith.constant 0 : i32
    return %c0_i32, %c0_i32_0 : i32, i32
  }
  func.func @transform_7(%arg0: i32) -> (i32, i32) {
    %c0_i32 = arith.constant 0 : i32
    %c0_i32_0 = arith.constant 0 : i32
    return %arg0, %c0_i32 : i32, i32
  }
}

</mosaic_0001>

<llo_original>
// kernel: tpu_custom_call.1
$region0: #{tpu_custom_call.1}
  #allocation0 [shape = 'u32[]', space=smem, size = 0x4, offset = 0x4, fixed_abs, tag = 'smem constant byte address 0x4 - core index']
  #allocation1 [shape = 'u32[144,128]{1,0:T(1,128)}', space=vmem, size = 0x12000, scoped, tag = 'internal scratch']
  %s0 = inlined_call_operand.vmem [shape: f32[24,32], index: 0, kind: input, shape index: {}]
  %s1 = inlined_call_operand.hbm [shape: f32[32,128], index: 1, kind: input, shape index: {}]
  %s2 = inlined_call_operand.vmem [shape: f32[1,128], index: 2, kind: input, shape index: {}]
  %s3 = inlined_call_operand.vmem [shape: f32[128,128], index: 3, kind: input, shape index: {}]
  %s4 = inlined_call_operand.vmem [shape: f32[1,128], index: 4, kind: input, shape index: {}]
  %s5 = inlined_call_operand.vmem [shape: f32[128,16], index: 5, kind: input, shape index: {}]
  %s6 = inlined_call_operand.vmem [shape: f32[1,16], index: 6, kind: input, shape index: {}]
  %s7 = inlined_call_operand.vmem [shape: f32[24,16], index: 7, kind: output, shape index: {}]
  %s8 = sld [smem:[#allocation0]]
  $region113: #{tpu_custom_call.1} parent=0
    _
  %s10 = ssub.s32 1, %s8
  %s11 = scalar_select 0, %s10, %s8
  $region1: #{tpu_custom_call.1} parent=0
    #allocation2 [shape = 'u8[16384]{0}', space=vmem, size = 0x4000, scoped, tag = 'input window, operand 1, single buffered']
    #allocation3 [shape = 's32[2]{0}', space=sflag, size = 0x8, scoped, tag = 'scoped memory for tpu_custom_call.1']
    #allocation4 [shape = 'u8[16384]{0}', space=vmem, size = 0x4000, scoped, tag = 'output window, operand 0']
    %12 = vsyncpa [#allocation3], 0
    loop: start=0, step=1, limit=4
    $region2: #{tpu_custom_call.1} parent=1 // loop_pre_header
      _
    $region3: #{tpu_custom_call.1} parent=1 // loop_header
      %s14 = sphi 0, %s18
      %p15 = scmp.ge.s32.totalorder %s14, 4
      %s24 = sphi 0, %s26
      %s27 = sphi 0, %s24
      %s28 = sphi 0, %s27
      %s44 = sphi 0, %s28
      %s48 = sphi 0, %s48
      %s50 = sphi 0, %s48
      %s51 = sphi 0, %s50
      %s65 = sphi 0, %s51
      %s69 = sphi 0, %s69
      %s71 = sphi 0, %s69
      %s72 = sphi 0, %s71
      %s86 = sphi 0, %s72
      %s90 = sphi 0, %s90
      %s92 = sphi 0, %s90
      %s93 = sphi 0, %s92
      %s107 = sphi 0, %s93
      %s111 = sphi 0, %s111
      %s113 = sphi 0, %s111
      %s114 = sphi 0, %s113
      %s128 = sphi 0, %s114
      %s132 = sphi 0, %s132
      %s134 = sphi 0, %s132
      %s135 = sphi 0, %s134
      %s149 = sphi 0, %s135
      %s153 = sphi 0, %s153
      %s155 = sphi 0, %s153
      %s156 = sphi 0, %s155
      %s170 = sphi 0, %s156
      %s176 = sphi 0, %s178
      %s179 = sphi 0, %s176
      %s180 = sphi 0, %s179
      %s196 = sphi 0, %s180
    $region4: #{tpu_custom_call.1} parent=1 // loop_header_branch
      %17 = sbr.rel (%p15) target = $region8
    $region5: #{tpu_custom_call.1} parent=1 // loop_body
      %s19 = ssub.s32 %s14, 1
      %s20 = ssub.s32 %s14, 2
      %s21 = sadd.s32 %s14, 1
      %s22 = ssub.s32 %s14, %s21
      %p23 = scmp.eq.s32.totalorder %s22, 0
      %s25 = sadd.s32 %s24, 1
      %s26 = scalar_select %p23, %s24, %s25
      %p29 = pneg %p23
      %p30 = scmp.eq.s32.totalorder %s14, 1
      %p31 = por %p29, %p30
      %p32 = scmp.ne.s32.totalorder %s24, %s27
      %p33 = scmp.eq.s32.totalorder %s14, 0
      %p34 = por %p32, %p33
      %p35 = scmp.ne.s32.totalorder %s24, %s27
      %p36 = scmp.eq.s32.totalorder %s19, 1
      %p37 = por %p35, %p36
      %p38 = scmp.ne.s32.totalorder %s27, %s28
      %p39 = scmp.eq.s32.totalorder %s19, 0
      %p40 = por %p38, %p39
      %p41 = scmp.ne.s32.totalorder %s27, %s28
      %p42 = scmp.eq.s32.totalorder %s20, 1
      %p43 = por %p41, %p42
      %p45 = scmp.ne.s32.totalorder %s28, %s44
      %p46 = scmp.eq.s32.totalorder %s20, 0
      %p47 = por %p45, %p46
      %s49 = sadd.s32 %s48, 1
      %p52 = scmp.eq.s32.totalorder %s14, 1
      %p53 = scmp.ne.s32.totalorder %s48, %s50
      %p54 = scmp.eq.s32.totalorder %s14, 0
      %p55 = por %p53, %p54
      %p56 = scmp.ne.s32.totalorder %s48, %s50
      %p57 = scmp.eq.s32.totalorder %s19, 1
      %p58 = por %p56, %p57
      %p59 = scmp.ne.s32.totalorder %s50, %s51
      %p60 = scmp.eq.s32.totalorder %s19, 0
      %p61 = por %p59, %p60
      %p62 = scmp.ne.s32.totalorder %s50, %s51
      %p63 = scmp.eq.s32.totalorder %s20, 1
      %p64 = por %p62, %p63
      %p66 = scmp.ne.s32.totalorder %s51, %s65
      %p67 = scmp.eq.s32.totalorder %s20, 0
      %p68 = por %p66, %p67
      %s70 = sadd.s32 %s69, 1
      %p73 = scmp.eq.s32.totalorder %s14, 1
      %p74 = scmp.ne.s32.totalorder %s69, %s71
      %p75 = scmp.eq.s32.totalorder %s14, 0
      %p76 = por %p74, %p75
      %p77 = scmp.ne.s32.totalorder %s69, %s71
      %p78 = scmp.eq.s32.totalorder %s19, 1
      %p79 = por %p77, %p78
      %p80 = scmp.ne.s32.totalorder %s71, %s72
      %p81 = scmp.eq.s32.totalorder %s19, 0
      %p82 = por %p80, %p81
      %p83 = scmp.ne.s32.totalorder %s71, %s72
      %p84 = scmp.eq.s32.totalorder %s20, 1
      %p85 = por %p83, %p84
      %p87 = scmp.ne.s32.totalorder %s72, %s86
      %p88 = scmp.eq.s32.totalorder %s20, 0
      %p89 = por %p87, %p88
      %s91 = sadd.s32 %s90, 1
      %p94 = scmp.eq.s32.totalorder %s14, 1
      %p95 = scmp.ne.s32.totalorder %s90, %s92
      %p96 = scmp.eq.s32.totalorder %s14, 0
      %p97 = por %p95, %p96
      %p98 = scmp.ne.s32.totalorder %s90, %s92
      %p99 = scmp.eq.s32.totalorder %s19, 1
      %p100 = por %p98, %p99
      %p101 = scmp.ne.s32.totalorder %s92, %s93
      %p102 = scmp.eq.s32.totalorder %s19, 0
      %p103 = por %p101, %p102
      %p104 = scmp.ne.s32.totalorder %s92, %s93
      %p105 = scmp.eq.s32.totalorder %s20, 1
      %p106 = por %p104, %p105
      %p108 = scmp.ne.s32.totalorder %s93, %s107
      %p109 = scmp.eq.s32.totalorder %s20, 0
      %p110 = por %p108, %p109
      %s112 = sadd.s32 %s111, 1
      %p115 = scmp.eq.s32.totalorder %s14, 1
      %p116 = scmp.ne.s32.totalorder %s111, %s113
      %p117 = scmp.eq.s32.totalorder %s14, 0
      %p118 = por %p116, %p117
      %p119 = scmp.ne.s32.totalorder %s111, %s113
      %p120 = scmp.eq.s32.totalorder %s19, 1
      %p121 = por %p119, %p120
      %p122 = scmp.ne.s32.totalorder %s113, %s114
      %p123 = scmp.eq.s32.totalorder %s19, 0
      %p124 = por %p122, %p123
      %p125 = scmp.ne.s32.totalorder %s113, %s114
      %p126 = scmp.eq.s32.totalorder %s20, 1
      %p127 = por %p125, %p126
      %p129 = scmp.ne.s32.totalorder %s114, %s128
      %p130 = scmp.eq.s32.totalorder %s20, 0
      %p131 = por %p129, %p130
      %s133 = sadd.s32 %s132, 1
      %p136 = scmp.eq.s32.totalorder %s14, 1
      %p137 = scmp.ne.s32.totalorder %s132, %s134
      %p138 = scmp.eq.s32.totalorder %s14, 0
      %p139 = por %p137, %p138
      %p140 = scmp.ne.s32.totalorder %s132, %s134
      %p141 = scmp.eq.s32.totalorder %s19, 1
      %p142 = por %p140, %p141
      %p143 = scmp.ne.s32.totalorder %s134, %s135
      %p144 = scmp.eq.s32.totalorder %s19, 0
      %p145 = por %p143, %p144
      %p146 = scmp.ne.s32.totalorder %s134, %s135
      %p147 = scmp.eq.s32.totalorder %s20, 1
      %p148 = por %p146, %p147
      %p150 = scmp.ne.s32.totalorder %s135, %s149
      %p151 = scmp.eq.s32.totalorder %s20, 0
      %p152 = por %p150, %p151
      %s154 = sadd.s32 %s153, 1
      %p157 = scmp.eq.s32.totalorder %s14, 1
      %p158 = scmp.ne.s32.totalorder %s153, %s155
      %p159 = scmp.eq.s32.totalorder %s14, 0
      %p160 = por %p158, %p159
      %p161 = scmp.ne.s32.totalorder %s153, %s155
      %p162 = scmp.eq.s32.totalorder %s19, 1
      %p163 = por %p161, %p162
      %p164 = scmp.ne.s32.totalorder %s155, %s156
      %p165 = scmp.eq.s32.totalorder %s19, 0
      %p166 = por %p164, %p165
      %p167 = scmp.ne.s32.totalorder %s155, %s156
      %p168 = scmp.eq.s32.totalorder %s20, 1
      %p169 = por %p167, %p168
      %p171 = scmp.ne.s32.totalorder %s156, %s170
      %p172 = scmp.eq.s32.totalorder %s20, 0
      %p173 = por %p171, %p172
      %s174 = ssub.s32 %s14, %s21
      %p175 = scmp.eq.s32.totalorder %s174, 0
      %s177 = sadd.s32 %s176, 1
      %s178 = scalar_select %p175, %s176, %s177
      %p181 = pneg %p175
      %p182 = scmp.eq.s32.totalorder %s14, 1
      %p183 = por %p181, %p182
      %p184 = scmp.ne.s32.totalorder %s176, %s179
      %p185 = scmp.eq.s32.totalorder %s14, 0
      %p186 = por %p184, %p185
      %p187 = scmp.ne.s32.totalorder %s176, %s179
      %p188 = scmp.eq.s32.totalorder %s19, 1
      %p189 = por %p187, %p188
      %p190 = scmp.ne.s32.totalorder %s179, %s180
      %p191 = scmp.eq.s32.totalorder %s19, 0
      %p192 = por %p190, %p191
      %p193 = scmp.ne.s32.totalorder %s179, %s180
      %p194 = scmp.eq.s32.totalorder %s20, 1
      %p195 = por %p193, %p194
      %p197 = scmp.ne.s32.totalorder %s180, %s196
      %p198 = scmp.eq.s32.totalorder %s20, 0
      %p199 = por %p197, %p198
      %p200 = scmp.le.s32.totalorder 1, %s14
      %p201 = scmp.lt.s32.totalorder %s14, 3
      %p202 = pnand %p200, %p201
      %p203 = pneg %p202
      // Predicated region
      $region9: #{tpu_custom_call.1} parent=5 // pred_check
        _
      $region10: #{tpu_custom_call.1} parent=5 // pred_check_branch
        %205 = sbr.rel (%p202) target = $region12
      $region11: #{tpu_custom_call.1} parent=5 // pred_region
        %s206 = ssub.s32 %s14, 1
        // Predicated region
        $region13: #{tpu_custom_call.1} parent=11 // pred_check
          %p207 = pneg %p61
        $region14: #{tpu_custom_call.1} parent=11 // pred_check_branch
          %209 = sbr.rel (%p207) target = $region16
        $region15: #{tpu_custom_call.1} parent=11 // pred_region
          %s211 = ssub.s32 512, 512
          %212 = vsyncadd [#allocation3], %s211
          %s213 = sshll.u32 [#allocation2], 4
          %s214 = int_to_ptr.vmem [resolvable:$true] %s213
          %219 = dma.hbm_to_vmem [thread:$0]  %s1, 512, %s214, [#allocation3], 128, 128, 8
        $region16: #{tpu_custom_call.1} parent=11 // pred_fallthru
          _
        // Predicated region
        $region17: #{tpu_custom_call.1} parent=11 // pred_check
          %p220 = pneg %p82
        $region18: #{tpu_custom_call.1} parent=11 // pred_check_branch
          %222 = sbr.rel (%p220) target = $region20
        $region19: #{tpu_custom_call.1} parent=11 // pred_region
          _
        $region20: #{tpu_custom_call.1} parent=11 // pred_fallthru
          _
        // Predicated region
        $region21: #{tpu_custom_call.1} parent=11 // pred_check
          %p223 = pneg %p103
        $region22: #{tpu_custom_call.1} parent=11 // pred_check_branch
          %225 = sbr.rel (%p223) target = $region24
        $region23: #{tpu_custom_call.1} parent=11 // pred_region
          _
        $region24: #{tpu_custom_call.1} parent=11 // pred_fallthru
          _
        // Predicated region
        $region25: #{tpu_custom_call.1} parent=11 // pred_check
          %p226 = pneg %p124
        $region26: #{tpu_custom_call.1} parent=11 // pred_check_branch
          %228 = sbr.rel (%p226) target = $region28
        $region27: #{tpu_custom_call.1} parent=11 // pred_region
          _
        $region28: #{tpu_custom_call.1} parent=11 // pred_fallthru
          _
        // Predicated region
        $region29: #{tpu_custom_call.1} parent=11 // pred_check
          %p229 = pneg %p145
        $region30: #{tpu_custom_call.1} parent=11 // pred_check_branch
          %231 = sbr.rel (%p229) target = $region32
        $region31: #{tpu_custom_call.1} parent=11 // pred_region
          _
        $region32: #{tpu_custom_call.1} parent=11 // pred_fallthru
          _
        // Predicated region
        $region33: #{tpu_custom_call.1} parent=11 // pred_check
          %p232 = pneg %p166
        $region34: #{tpu_custom_call.1} parent=11 // pred_check_branch
          %234 = sbr.rel (%p232) target = $region36
        $region35: #{tpu_custom_call.1} parent=11 // pred_region
          _
        $region36: #{tpu_custom_call.1} parent=11 // pred_fallthru
          _
      $region12: #{tpu_custom_call.1} parent=5 // pred_fallthru
        _
      %p235 = scmp.lt.s32.totalorder %s14, 2
      // Predicated region
      $region37: #{tpu_custom_call.1} parent=5 // pred_check
        %p236 = pneg %p235
      $region38: #{tpu_custom_call.1} parent=5 // pred_check_branch
        %238 = sbr.rel (%p236) target = $region40
      $region39: #{tpu_custom_call.1} parent=5 // pred_region
        // Predicated region
        $region41: #{tpu_custom_call.1} parent=39 // pred_check
          %p239 = pneg %p34
        $region42: #{tpu_custom_call.1} parent=39 // pred_check_branch
          %241 = sbr.rel (%p239) target = $region44
        $region43: #{tpu_custom_call.1} parent=39 // pred_region
          %s242 = smul.u32 2, %s14
          %s243 = ssub.s32 3, %s242
          %p244 = scmp.lt.s32.totalorder %s243, 2
          %s245 = scalar_select %p244, %s243, 2
          %s246 = smul.u32 128, %s245
          %p247 = scmp.lt.s32.totalorder %s242, 2
          %s248 = scalar_select %p247, %s242, 2
          %s249 = smul.addr %s248, 8
          %s250 = scalar_lea.vmem %s0, %s249
          %s251 = smul.u32 2, %s14
          %s252 = ssub.s32 3, %s251
          %p253 = scmp.lt.s32.totalorder %s252, 2
          %s254 = scalar_select %p253, %s252, 2
          %s255 = smul.u32 128, %s254
        $region44: #{tpu_custom_call.1} parent=39 // pred_fallthru
          _
      $region40: #{tpu_custom_call.1} parent=5 // pred_fallthru
        _
      %p256 = scmp.le.s32.totalorder 1, %s14
      %p257 = scmp.lt.s32.totalorder %s14, 3
      %p258 = pnand %p256, %p257
      %p259 = pneg %p258
      // Predicated region
      $region45: #{tpu_custom_call.1} parent=5 // pred_check
        _
      $region46: #{tpu_custom_call.1} parent=5 // pred_check_branch
        %261 = sbr.rel (%p258) target = $region48
      $region47: #{tpu_custom_call.1} parent=5 // pred_region
        %s262 = ssub.s32 %s14, 1
        // Predicated region
        $region49: #{tpu_custom_call.1} parent=47 // pred_check
          %p263 = pneg %p61
        $region50: #{tpu_custom_call.1} parent=47 // pred_check_branch
          %265 = sbr.rel (%p263) target = $region52
        $region51: #{tpu_custom_call.1} parent=47 // pred_region
          %266 = dma.done [#allocation3], 512
        $region52: #{tpu_custom_call.1} parent=47 // pred_fallthru
          _
        %s267 = smul.u32 2, %s19
        %s268 = ssub.s32 3, %s267
        %p269 = scmp.lt.s32.totalorder %s268, 2
        %s270 = scalar_select %p269, %s268, 2
        %s271 = smul.u32 128, %s270
        %p272 = scmp.lt.s32.totalorder %s267, 2
        %s273 = scalar_select %p272, %s267, 2
        %s274 = smul.addr %s273, 8
        %s275 = scalar_lea.vmem %s0, %s274
        %p276 = pneg %p40
        %p277 = pneg %p37
        %p278 = pneg %p61
        %p279 = pneg %p58
        %p280 = pneg %p82
        %p281 = pneg %p79
        %p282 = pneg %p103
        %p283 = pneg %p100
        %p284 = pneg %p124
        %p285 = pneg %p121
        %p286 = pneg %p145
        %p287 = pneg %p142
        %p288 = pneg %p166
        %p289 = pneg %p163
        %p290 = pneg %p192
        %p291 = pneg %p189
        %s292 = sand.u32 %s179, 1
        %s293 = sand.u32 %s179, 1
        %s294 = smul.addr %s293, 16
        %s295 = scalar_lea.vmem [#allocation4], %s294
        %s296 = smul.u32 2, %s19
        %s297 = ssub.s32 3, %s296
        %p298 = scmp.lt.s32.totalorder %s297, 2
        %s299 = scalar_select %p298, %s297, 2
        %s300 = smul.u32 128, %s299
        %p301 = scmp.lt.s32.totalorder %s296, 2
        %s302 = scalar_select %p301, %s296, 2
        %s303 = smul.addr %s302, 8
        %s304 = scalar_lea.vmem %s0, %s303
        %s305 = smul.u32 2, %s19
        %s306 = ssub.s32 3, %s305
        %p307 = scmp.lt.s32.totalorder %s306, 2
        %s308 = scalar_select %p307, %s306, 2
        %s309 = smul.u32 128, %s308
        %s310 = smul.u32 2, %s19
        %s311 = ssub.s32 3, %s310
        %p312 = scmp.lt.s32.totalorder %s311, 2
        %s313 = scalar_select %p312, %s311, 2
        %s314 = smul.u32 128, %s313
        %v315 = vld [vmem:[%s304] sm:$0xff]
        %v316 = vld [vmem:[%s304 + $0x8] sm:$0xff]
        %v317 = vld [vmem:[#allocation2] sm:$0xff]
        %v318 = vld [vmem:[#allocation2 + $0x8] sm:$0xff]
        %v319 = vld [vmem:[#allocation2 + $0x10] sm:$0xff]
        %v320 = vld [vmem:[#allocation2 + $0x18] sm:$0xff]
        %v321 = vld [vmem:[%s2] sm:$0x1]
        %v323 = vlaneseq
        %v324 = vshrl.u32 %v323, 7
        %v325 = vsub.s32 0, %v324
        %v326 = vrot.slane %v321, %v325
        %vm328 = vcmask 261120
        %v330 = vsel %vm328, %v315, 0
        %v333 = vsel %vm328, %v316, 0
        %335 = vmatprep.subr.mxu0 0.0
        %336 = vmatpush1.msra.mxu0 %v317
        %337 = vmatprep.subr.mxu0 0.0
        %338 = vmatpush1.msra.mxu0 %v318
        %339 = vmatprep.subr.mxu0 0.0
        %340 = vmatpush1.msra.mxu0 %v319
        %341 = vmatprep.subr.mxu0 0.0
        %342 = vmatpush1.msra.mxu0 %v320
        %343 = vmatprep.subr.mxu0 0.0
        %344 = vmatpush1.msra.mxu0 0.0
        %345 = vmatprep.subr.mxu0 0.0
        %346 = vmatpush1.msra.mxu0 0.0
        %347 = vmatprep.subr.mxu0 0.0
        %348 = vmatpush1.msra.mxu0 0.0
        %349 = vmatprep.subr.mxu0 0.0
        %350 = vmatpush1.msra.mxu0 0.0
        %351 = vmatprep.subr.mxu0 0.0
        %352 = vmatpush1.msra.mxu0 0.0
        %353 = vmatprep.subr.mxu0 0.0
        %354 = vmatpush1.msra.mxu0 0.0
        %355 = vmatprep.subr.mxu0 0.0
        %356 = vmatpush1.msra.mxu0 0.0
        %357 = vmatprep.subr.mxu0 0.0
        %358 = vmatpush1.msra.mxu0 0.0
        %359 = vmatprep.subr.mxu0 0.0
        %360 = vmatpush1.msra.mxu0 0.0
        %361 = vmatprep.subr.mxu0 0.0
        %362 = vmatpush1.msra.mxu0 0.0
        %363 = vmatprep.subr.mxu0 0.0
        %364 = vmatpush1.msra.mxu0 0.0
        %365 = vmatprep.subr.mxu0 0.0
        %366 = vmatpush1.msra.mxu0 0.0
        %367 = vmatprep.subr.mxu0 0.0
        %368 = vmatpush1.msra.mxu0 0.0
        %369 = vmatprep.subr.mxu0 0.0
        %370 = vmatpush1.msra.mxu0 0.0
        %371 = vmatprep.subr.mxu0 0.0
        %372 = vmatpush1.msra.mxu0 0.0
        %373 = vmatprep.subr.mxu0 0.0
        %374 = vmatpush1.msra.mxu0 0.0
        %375 = vmatprep.subr.mxu0 0.0
        %376 = vmatpush1.msra.mxu0 0.0
        %377 = vmatprep.subr.mxu0 0.0
        %378 = vmatpush1.msra.mxu0 0.0
        %379 = vmatprep.subr.mxu0 0.0
        %380 = vmatpush1.msra.mxu0 0.0
        %381 = vmatprep.subr.mxu0 0.0
        %382 = vmatpush1.msra.mxu0 0.0
        %383 = vmatprep.subr.mxu0 0.0
        %384 = vmatpush1.msra.mxu0 0.0
        %385 = vmatprep.subr.mxu0 0.0
        %386 = vmatpush1.msra.mxu0 0.0
        %387 = vmatprep.subr.mxu0 0.0
        %388 = vmatpush1.msra.mxu0 0.0
        %389 = vmatprep.subr.mxu0 0.0
        %390 = vmatpush1.msra.mxu0 0.0
        %391 = vmatprep.subr.mxu0 0.0
        %392 = vmatpush1.msra.mxu0 0.0
        %393 = vmatprep.subr.mxu0 0.0
        %394 = vmatpush1.msra.mxu0 0.0
        %395 = vmatprep.subr.mxu0 0.0
        %396 = vmatpush1.msra.mxu0 0.0
        %397 = vmatprep.subr.mxu0 0.0
        %398 = vmatpush1.msra.mxu0 0.0
        %399 = vmatprep.mubr.f32.mxu0 0.0
        %400 = vmatmul.mubr.f32.gmra.mrb[0].mxu0 %v330
        %v401 = vpop.f32.mrb[0].mxu0
        %v402 = vadd.f32 %v326, %v401
        %v403 = vpop.f32.mrb[0].mxu0
        %404 = vmatprep.mubr.f32.mxu0 0.0
        %405 = vmatmul.mubr.f32.gmra.mrb[0].mxu0 %v333
        %v406 = vpop.f32.mrb[0].mxu0
        %v407 = vadd.f32 %v326, %v406
        %v408 = vpop.f32.mrb[0].mxu0
        %409 = vdwg.mxu0
        %v410 = vmax.f32 %v402, 0.0
        %v411 = vmax.f32 %v407, 0.0
        %v412 = vld [vmem:[%s3] sm:$0xff]
        %v413 = vld [vmem:[%s3 + $0x8] sm:$0xff]
        %v414 = vld [vmem:[%s3 + $0x10] sm:$0xff]
        %v415 = vld [vmem:[%s3 + $0x18] sm:$0xff]
        %v416 = vld [vmem:[%s3 + $0x20] sm:$0xff]
        %v417 = vld [vmem:[%s3 + $0x28] sm:$0xff]
        %v418 = vld [vmem:[%s3 + $0x30] sm:$0xff]
        %v419 = vld [vmem:[%s3 + $0x38] sm:$0xff]
        %v420 = vld [vmem:[%s3 + $0x40] sm:$0xff]
        %v421 = vld [vmem:[%s3 + $0x48] sm:$0xff]
        %v422 = vld [vmem:[%s3 + $0x50] sm:$0xff]
        %v423 = vld [vmem:[%s3 + $0x58] sm:$0xff]
        %v424 = vld [vmem:[%s3 + $0x60] sm:$0xff]
        %v425 = vld [vmem:[%s3 + $0x68] sm:$0xff]
        %v426 = vld [vmem:[%s3 + $0x70] sm:$0xff]
        %v427 = vld [vmem:[%s3 + $0x78] sm:$0xff]
        %v428 = vld [vmem:[%s4] sm:$0x1]
        %v430 = vlaneseq
        %v431 = vshrl.u32 %v430, 7
        %v432 = vsub.s32 0, %v431
        %v433 = vrot.slane %v428, %v432
        %435 = vmatprep.subr.mxu0 0.0
        %436 = vmatpush1.msra.mxu0 %v412
        %437 = vmatprep.subr.mxu0 0.0
        %438 = vmatpush1.msra.mxu0 %v413
        %439 = vmatprep.subr.mxu0 0.0
        %440 = vmatpush1.msra.mxu0 %v414
        %441 = vmatprep.subr.mxu0 0.0
        %442 = vmatpush1.msra.mxu0 %v415
        %443 = vmatprep.subr.mxu0 0.0
        %444 = vmatpush1.msra.mxu0 %v416
        %445 = vmatprep.subr.mxu0 0.0
        %446 = vmatpush1.msra.mxu0 %v417
        %447 = vmatprep.subr.mxu0 0.0
        %448 = vmatpush1.msra.mxu0 %v418
        %449 = vmatprep.subr.mxu0 0.0
        %450 = vmatpush1.msra.mxu0 %v419
        %451 = vmatprep.subr.mxu0 0.0
        %452 = vmatpush1.msra.mxu0 %v420
        %453 = vmatprep.subr.mxu0 0.0
        %454 = vmatpush1.msra.mxu0 %v421
        %455 = vmatprep.subr.mxu0 0.0
        %456 = vmatpush1.msra.mxu0 %v422
        %457 = vmatprep.subr.mxu0 0.0
        %458 = vmatpush1.msra.mxu0 %v423
        %459 = vmatprep.subr.mxu0 0.0
        %460 = vmatpush1.msra.mxu0 %v424
        %461 = vmatprep.subr.mxu0 0.0
        %462 = vmatpush1.msra.mxu0 %v425
        %463 = vmatprep.subr.mxu0 0.0
        %464 = vmatpush1.msra.mxu0 %v426
        %465 = vmatprep.subr.mxu0 0.0
        %466 = vmatpush1.msra.mxu0 %v427
        %467 = vmatprep.subr.mxu0 0.0
        %468 = vmatpush1.msra.mxu0 0.0
        %469 = vmatprep.subr.mxu0 0.0
        %470 = vmatpush1.msra.mxu0 0.0
        %471 = vmatprep.subr.mxu0 0.0
        %472 = vmatpush1.msra.mxu0 0.0
        %473 = vmatprep.subr.mxu0 0.0
        %474 = vmatpush1.msra.mxu0 0.0
        %475 = vmatprep.subr.mxu0 0.0
        %476 = vmatpush1.msra.mxu0 0.0
        %477 = vmatprep.subr.mxu0 0.0
        %478 = vmatpush1.msra.mxu0 0.0
        %479 = vmatprep.subr.mxu0 0.0
        %480 = vmatpush1.msra.mxu0 0.0
        %481 = vmatprep.subr.mxu0 0.0
        %482 = vmatpush1.msra.mxu0 0.0
        %483 = vmatprep.subr.mxu0 0.0
        %484 = vmatpush1.msra.mxu0 0.0
        %485 = vmatprep.subr.mxu0 0.0
        %486 = vmatpush1.msra.mxu0 0.0
        %487 = vmatprep.subr.mxu0 0.0
        %488 = vmatpush1.msra.mxu0 0.0
        %489 = vmatprep.subr.mxu0 0.0
        %490 = vmatpush1.msra.mxu0 0.0
        %491 = vmatprep.subr.mxu0 0.0
        %492 = vmatpush1.msra.mxu0 0.0
        %493 = vmatprep.subr.mxu0 0.0
        %494 = vmatpush1.msra.mxu0 0.0
        %495 = vmatprep.subr.mxu0 0.0
        %496 = vmatpush1.msra.mxu0 0.0
        %497 = vmatprep.subr.mxu0 0.0
        %498 = vmatpush1.msra.mxu0 0.0
        %499 = vmatprep.mubr.f32.mxu0 0.0
        %500 = vmatmul.mubr.f32.gmra.mrb[0].mxu0 %v410
        %v501 = vpop.f32.mrb[0].mxu0
        %v502 = vadd.f32 %v433, %v501
        %v503 = vpop.f32.mrb[0].mxu0
        %504 = vmatprep.mubr.f32.mxu0 0.0
        %505 = vmatmul.mubr.f32.gmra.mrb[0].mxu0 %v411
        %v506 = vpop.f32.mrb[0].mxu0
        %v507 = vadd.f32 %v433, %v506
        %v508 = vpop.f32.mrb[0].mxu0
        %509 = vdwg.mxu0
        %v510 = vmax.f32 %v502, 0.0
        %v511 = vmax.f32 %v507, 0.0
        %v512 = vld [vmem:[%s5] sm:$0xff]
        %v513 = vld [vmem:[%s5 + $0x8] sm:$0xff]
        %v514 = vld [vmem:[%s5 + $0x10] sm:$0xff]
        %v515 = vld [vmem:[%s5 + $0x18] sm:$0xff]
        %v516 = vld [vmem:[%s5 + $0x20] sm:$0xff]
        %v517 = vld [vmem:[%s5 + $0x28] sm:$0xff]
        %v518 = vld [vmem:[%s5 + $0x30] sm:$0xff]
        %v519 = vld [vmem:[%s5 + $0x38] sm:$0xff]
        %v520 = vld [vmem:[%s5 + $0x40] sm:$0xff]
        %v521 = vld [vmem:[%s5 + $0x48] sm:$0xff]
        %v522 = vld [vmem:[%s5 + $0x50] sm:$0xff]
        %v523 = vld [vmem:[%s5 + $0x58] sm:$0xff]
        %v524 = vld [vmem:[%s5 + $0x60] sm:$0xff]
        %v525 = vld [vmem:[%s5 + $0x68] sm:$0xff]
        %v526 = vld [vmem:[%s5 + $0x70] sm:$0xff]
        %v527 = vld [vmem:[%s5 + $0x78] sm:$0xff]
        %v528 = vld [vmem:[%s6] sm:$0x1]
        %v530 = vlaneseq
        %v531 = vshrl.u32 %v530, 7
        %v532 = vsub.s32 0, %v531
        %v533 = vrot.slane %v528, %v532
        %535 = vmatprep.subr.mxu0 0.0
        %536 = vmatpush1.msra.mxu0 %v512
        %537 = vmatprep.subr.mxu0 0.0
        %538 = vmatpush1.msra.mxu0 %v513
        %539 = vmatprep.subr.mxu0 0.0
        %540 = vmatpush1.msra.mxu0 %v514
        %541 = vmatprep.subr.mxu0 0.0
        %542 = vmatpush1.msra.mxu0 %v515
        %543 = vmatprep.subr.mxu0 0.0
        %544 = vmatpush1.msra.mxu0 %v516
        %545 = vmatprep.subr.mxu0 0.0
        %546 = vmatpush1.msra.mxu0 %v517
        %547 = vmatprep.subr.mxu0 0.0
        %548 = vmatpush1.msra.mxu0 %v518
        %549 = vmatprep.subr.mxu0 0.0
        %550 = vmatpush1.msra.mxu0 %v519
        %551 = vmatprep.subr.mxu0 0.0
        %552 = vmatpush1.msra.mxu0 %v520
        %553 = vmatprep.subr.mxu0 0.0
        %554 = vmatpush1.msra.mxu0 %v521
        %555 = vmatprep.subr.mxu0 0.0
        %556 = vmatpush1.msra.mxu0 %v522
        %557 = vmatprep.subr.mxu0 0.0
        %558 = vmatpush1.msra.mxu0 %v523
        %559 = vmatprep.subr.mxu0 0.0
        %560 = vmatpush1.msra.mxu0 %v524
        %561 = vmatprep.subr.mxu0 0.0
        %562 = vmatpush1.msra.mxu0 %v525
        %563 = vmatprep.subr.mxu0 0.0
        %564 = vmatpush1.msra.mxu0 %v526
        %565 = vmatprep.subr.mxu0 0.0
        %566 = vmatpush1.msra.mxu0 %v527
        %567 = vmatprep.subr.mxu0 0.0
        %568 = vmatpush1.msra.mxu0 0.0
        %569 = vmatprep.subr.mxu0 0.0
        %570 = vmatpush1.msra.mxu0 0.0
        %571 = vmatprep.subr.mxu0 0.0
        %572 = vmatpush1.msra.mxu0 0.0
        %573 = vmatprep.subr.mxu0 0.0
        %574 = vmatpush1.msra.mxu0 0.0
        %575 = vmatprep.subr.mxu0 0.0
        %576 = vmatpush1.msra.mxu0 0.0
        %577 = vmatprep.subr.mxu0 0.0
        %578 = vmatpush1.msra.mxu0 0.0
        %579 = vmatprep.subr.mxu0 0.0
        %580 = vmatpush1.msra.mxu0 0.0
        %581 = vmatprep.subr.mxu0 0.0
        %582 = vmatpush1.msra.mxu0 0.0
        %583 = vmatprep.subr.mxu0 0.0
        %584 = vmatpush1.msra.mxu0 0.0
        %585 = vmatprep.subr.mxu0 0.0
        %586 = vmatpush1.msra.mxu0 0.0
        %587 = vmatprep.subr.mxu0 0.0
        %588 = vmatpush1.msra.mxu0 0.0
        %589 = vmatprep.subr.mxu0 0.0
        %590 = vmatpush1.msra.mxu0 0.0
        %591 = vmatprep.subr.mxu0 0.0
        %592 = vmatpush1.msra.mxu0 0.0
        %593 = vmatprep.subr.mxu0 0.0
        %594 = vmatpush1.msra.mxu0 0.0
        %595 = vmatprep.subr.mxu0 0.0
        %596 = vmatpush1.msra.mxu0 0.0
        %597 = vmatprep.subr.mxu0 0.0
        %598 = vmatpush1.msra.mxu0 0.0
        %599 = vmatprep.mubr.f32.mxu0 0.0
        %600 = vmatmul.mubr.f32.gmra.mrb[0].mxu0 %v510
        %v601 = vpop.f32.mrb[0].mxu0
        %v602 = vadd.f32 %v533, %v601
        %v603 = vpop.f32.mrb[0].mxu0
        %604 = vmatprep.mubr.f32.mxu0 0.0
        %605 = vmatmul.mubr.f32.gmra.mrb[0].mxu0 %v511
        %v606 = vpop.f32.mrb[0].mxu0
        %v607 = vadd.f32 %v533, %v606
        %v608 = vpop.f32.mrb[0].mxu0
        %609 = vdwg.mxu0
        %vm610 = vcmask 130048
        %611 = vst.msk [vmem:[%s295] sm:$0xff] %vm610, %v602
        %612 = vst.msk [vmem:[%s295 + $0x8] sm:$0xff] %vm610, %v607
        %s613 = sand.u32 %s179, 1
        %s614 = sand.u32 %s179, 1
        %s615 = smul.addr %s614, 16
        %s616 = scalar_lea.vmem [#allocation4], %s615
        // Predicated region
        $region53: #{tpu_custom_call.1} parent=47 // pred_check
          %p617 = pneg %p189
        $region54: #{tpu_custom_call.1} parent=47 // pred_check_branch
          %619 = sbr.rel (%p617) target = $region56
        $region55: #{tpu_custom_call.1} parent=47 // pred_region
          %s620 = smul.u32 2, %s19
          %s621 = ssub.s32 3, %s620
          %p622 = scmp.lt.s32.totalorder %s621, 2
          %s623 = scalar_select %p622, %s621, 2
          %s624 = smul.u32 128, %s623
          %p625 = scmp.ne.s32.totalorder 0, %s624
          %s626 = smul.addr %s620, 8
          %s627 = scalar_lea.vmem %s7, %s626
          // Predicated region
          $region57: #{tpu_custom_call.1} parent=55 // pred_check
            %p628 = pneg %p625
          $region58: #{tpu_custom_call.1} parent=55 // pred_check_branch
            %630 = sbr.rel (%p628) target = $region60
          $region59: #{tpu_custom_call.1} parent=55 // pred_region
            // Predicated region
            $region61: #{tpu_custom_call.1} parent=59 // pred_check
              _
            $region62: #{tpu_custom_call.1} parent=59 // pred_check_branch
              %632 = sbr.rel (0) target = $region64
            $region63: #{tpu_custom_call.1} parent=59 // pred_region
              // Predicated region
              $region83: #{tpu_custom_call.1} parent=63 // pred_check
                _
              $region84: #{tpu_custom_call.1} parent=63 // pred_check_branch
                %683 = sbr.rel (0) target = $region86
              $region85: #{tpu_custom_call.1} parent=63 // pred_region
                %s684 = sshrl.u32 %s623, 1
                // While loop
                $region87: #{tpu_custom_call.1} parent=85 // loop_pre_header
                  _
                $region88: #{tpu_custom_call.1} parent=85 // loop_header
                  %s686 = sphi 0, %s688
                  %p687 = scmp.ge.s32.totalorder %s686, %s684
                  %s691 = sphi 0, %s700
                  %s692 = sphi %s616, %s703
                  %s693 = sphi %s627, %s704
                $region89: #{tpu_custom_call.1} parent=85 // loop_header_branch
                  %690 = sbr.rel (%p687) target = $region93
                $region90: #{tpu_custom_call.1} parent=85 // loop_body
                  %v694 = vld [vmem:[%s692] sm:$0xff]
                  %695 = vst [vmem:[%s693] sm:$0xff] %v694
                  %v696 = vld [vmem:[%s692 + $0x8] sm:$0xff]
                  %697 = vst [vmem:[%s693 + $0x8] sm:$0xff] %v696
                  %s698 = sadd.s32 1, %s691
                  %p699 = scmp.ge.s32.totalorder %s698, %s684
                  %s700 = scalar_select %p699, 0, %s698
                  %s701 = smul.u32 %s700, 16
                  %s702 = smul.u32 %s700, 16
                  %s703 = scalar_lea.vmem %s616, %s701 [#allocation4]
                  %s704 = scalar_lea.vmem %s627, %s702
                $region91: #{tpu_custom_call.1} parent=85 // loop_footer
                  %s688 = sadd.s32 %s686, 1
                $region92: #{tpu_custom_call.1} parent=85 // loop_footer_branch
                  %685 = sbr.rel target = $region88
                $region93: #{tpu_custom_call.1} parent=85 // loop_exit
                  _
                %s705 = sshrl.u32 %s623, 1
                %s706 = sand.u32 %s623, 1
                %s707 = smul.u32 %s705, 2
                %s708 = smul.u32 8, %s707
                %s709 = scalar_lea.vmem %s616, %s708 [#allocation4]
                %s710 = smul.u32 8, %s707
                %s711 = scalar_lea.vmem %s627, %s710
                // While loop
                $region94: #{tpu_custom_call.1} parent=85 // loop_pre_header
                  _
                $region95: #{tpu_custom_call.1} parent=85 // loop_header
                  %s713 = sphi 0, %s715
                  %p714 = scmp.ge.s32.totalorder %s713, %s706
                  %s718 = sphi 0, %s725
                  %s719 = sphi %s709, %s728
                  %s720 = sphi %s711, %s729
                $region96: #{tpu_custom_call.1} parent=85 // loop_header_branch
                  %717 = sbr.rel (%p714) target = $region100
                $region97: #{tpu_custom_call.1} parent=85 // loop_body
                  %v721 = vld [vmem:[%s719] sm:$0xff]
                  %722 = vst [vmem:[%s720] sm:$0xff] %v721
                  %s723 = sadd.s32 1, %s718
                  %p724 = scmp.ge.s32.totalorder %s723, %s706
                  %s725 = scalar_select %p724, 0, %s723
                  %s726 = smul.u32 %s725, 8
                  %s727 = smul.u32 %s725, 8
                  %s728 = scalar_lea.vmem %s709, %s726 [#allocation4]
                  %s729 = scalar_lea.vmem %s711, %s727
                $region98: #{tpu_custom_call.1} parent=85 // loop_footer
                  %s715 = sadd.s32 %s713, 1
                $region99: #{tpu_custom_call.1} parent=85 // loop_footer_branch
                  %712 = sbr.rel target = $region95
                $region100: #{tpu_custom_call.1} parent=85 // loop_exit
                  _
              $region86: #{tpu_custom_call.1} parent=63 // pred_fallthru
                _
              // Predicated region
              $region101: #{tpu_custom_call.1} parent=63 // pred_check
                _
              $region102: #{tpu_custom_call.1} parent=63 // pred_check_branch
                %731 = sbr.rel target = $region104
              $region103: #{tpu_custom_call.1} parent=63 // pred_region
                _
              $region104: #{tpu_custom_call.1} parent=63 // pred_fallthru
                _
            $region64: #{tpu_custom_call.1} parent=59 // pred_fallthru
              _
            // Predicated region
            $region65: #{tpu_custom_call.1} parent=59 // pred_check
              _
            $region66: #{tpu_custom_call.1} parent=59 // pred_check_branch
              %634 = sbr.rel target = $region68
            $region67: #{tpu_custom_call.1} parent=59 // pred_region
              %s636 = sshrl.u32 %s623, 1
              // While loop
              $region69: #{tpu_custom_call.1} parent=67 // loop_pre_header
                _
              $region70: #{tpu_custom_call.1} parent=67 // loop_header
                %s638 = sphi 0, %s640
                %p639 = scmp.ge.s32.totalorder %s638, %s636
                %s643 = sphi 0, %s652
                %s644 = sphi %s616, %s655
                %s645 = sphi %s627, %s656
              $region71: #{tpu_custom_call.1} parent=67 // loop_header_branch
                %642 = sbr.rel (%p639) target = $region75
              $region72: #{tpu_custom_call.1} parent=67 // loop_body
                %v646 = vld [vmem:[%s644] sm:$0xff]
                %647 = vst [vmem:[%s645] sm:$0xff] %v646
                %v648 = vld [vmem:[%s644 + $0x8] sm:$0xff]
                %649 = vst [vmem:[%s645 + $0x8] sm:$0xff] %v648
                %s650 = sadd.s32 1, %s643
                %p651 = scmp.ge.s32.totalorder %s650, %s636
                %s652 = scalar_select %p651, 0, %s650
                %s653 = smul.u32 %s652, 16
                %s654 = smul.u32 %s652, 16
                %s655 = scalar_lea.vmem %s616, %s653 [#allocation4]
                %s656 = scalar_lea.vmem %s627, %s654
              $region73: #{tpu_custom_call.1} parent=67 // loop_footer
                %s640 = sadd.s32 %s638, 1
              $region74: #{tpu_custom_call.1} parent=67 // loop_footer_branch
                %637 = sbr.rel target = $region70
              $region75: #{tpu_custom_call.1} parent=67 // loop_exit
                _
              %s657 = sshrl.u32 %s623, 1
              %s658 = sand.u32 %s623, 1
              %s659 = smul.u32 %s657, 2
              %s660 = smul.u32 8, %s659
              %s661 = scalar_lea.vmem %s616, %s660 [#allocation4]
              %s662 = smul.u32 8, %s659
              %s663 = scalar_lea.vmem %s627, %s662
              // While loop
              $region76: #{tpu_custom_call.1} parent=67 // loop_pre_header
                _
              $region77: #{tpu_custom_call.1} parent=67 // loop_header
                %s665 = sphi 0, %s667
                %p666 = scmp.ge.s32.totalorder %s665, %s658
                %s670 = sphi 0, %s677
                %s671 = sphi %s661, %s680
                %s672 = sphi %s663, %s681
              $region78: #{tpu_custom_call.1} parent=67 // loop_header_branch
                %669 = sbr.rel (%p666) target = $region82
              $region79: #{tpu_custom_call.1} parent=67 // loop_body
                %v673 = vld [vmem:[%s671] sm:$0xff]
                %674 = vst [vmem:[%s672] sm:$0xff] %v673
                %s675 = sadd.s32 1, %s670
                %p676 = scmp.ge.s32.totalorder %s675, %s658
                %s677 = scalar_select %p676, 0, %s675
                %s678 = smul.u32 %s677, 8
                %s679 = smul.u32 %s677, 8
                %s680 = scalar_lea.vmem %s661, %s678 [#allocation4]
                %s681 = scalar_lea.vmem %s663, %s679
              $region80: #{tpu_custom_call.1} parent=67 // loop_footer
                %s667 = sadd.s32 %s665, 1
              $region81: #{tpu_custom_call.1} parent=67 // loop_footer_branch
                %664 = sbr.rel target = $region77
              $region82: #{tpu_custom_call.1} parent=67 // loop_exit
                _
            $region68: #{tpu_custom_call.1} parent=59 // pred_fallthru
              _
          $region60: #{tpu_custom_call.1} parent=55 // pred_fallthru
            _
          %732 = vnop
        $region56: #{tpu_custom_call.1} parent=47 // pred_fallthru
          _
      $region48: #{tpu_custom_call.1} parent=5 // pred_fallthru
        _
      %p733 = scmp.le.s32.totalorder 2, %s14
      // Predicated region
      $region105: #{tpu_custom_call.1} parent=5 // pred_check
        %p734 = pneg %p733
      $region106: #{tpu_custom_call.1} parent=5 // pred_check_branch
        %736 = sbr.rel (%p734) target = $region108
      $region107: #{tpu_custom_call.1} parent=5 // pred_region
        %s737 = ssub.s32 %s14, 2
        // Predicated region
        $region109: #{tpu_custom_call.1} parent=107 // pred_check
          %p738 = pneg %p195
        $region110: #{tpu_custom_call.1} parent=107 // pred_check_branch
          %740 = sbr.rel (%p738) target = $region112
        $region111: #{tpu_custom_call.1} parent=107 // pred_region
          %s741 = sand.u32 %s180, 1
          %s742 = sand.u32 %s180, 1
          %s743 = smul.addr %s742, 16
          %s744 = scalar_lea.vmem [#allocation4], %s743
        $region112: #{tpu_custom_call.1} parent=107 // pred_fallthru
          _
      $region108: #{tpu_custom_call.1} parent=5 // pred_fallthru
        _
    $region6: #{tpu_custom_call.1} parent=1 // loop_footer
      %s18 = sadd.s32 1, %s14
    $region7: #{tpu_custom_call.1} parent=1 // loop_footer_branch
      %13 = sbr.rel target = $region3
    $region8: #{tpu_custom_call.1} parent=1 // loop_exit
      _
    %745 = vsyncpa [#allocation3], 1
    %s746 = scalar_lea.sflag [#allocation3], 1
    %747 = vsyncpa %s746, 1

</llo_original>
